<compile_context>
chip_gen: v7x
topology: tpu7x:2x2x1
jax: 0.10.0
libtpu: 0.0.40
codegen_flags: <defaults>
</compile_context>

<pallas_src>
from functools import partial
from math import gcd

import jax
import jax.numpy as jnp
from jax.experimental import pallas as pl
from jax.experimental.pallas import tpu as pltpu

LN_EPS = 1e-5  # matches torch.nn.LayerNorm default


def _prenorm_ln_kernel(x_ref, g_ref, b_ref, o_ref, *, k, d):
    """LayerNorm over `k` independent segments of length `d` packed along the lane axis.

    x_ref: (TILE_ROWS, k*d) input dtype; g_ref/b_ref: (1, k*d) f32 (gamma/beta tiled k times).
    k == 1 is the plain whole-row LayerNorm path (d % 128 == 0).
    """
    x = x_ref[...].astype(jnp.float32)   # f32 accumulation
    g = g_ref[...]
    b = b_ref[...]
    inv_d = jnp.float32(1.0 / d)

    segs = []
    for j in range(k):                    # k is a static Python int (small)
        sl = slice(j * d, (j + 1) * d)
        xs = x[:, sl]
        # One-pass stats: sum and sum-of-squares in a single sweep.
        s1 = jnp.sum(xs, axis=-1, keepdims=True)
        s2 = jnp.sum(xs * xs, axis=-1, keepdims=True)
        mean = s1 * inv_d
        var = jnp.maximum(s2 * inv_d - mean * mean, 0.0)  # guard tiny negative (cancellation)
        inv_std = jax.lax.rsqrt(var + LN_EPS)
        segs.append((xs - mean) * inv_std * g[:, sl] + b[:, sl])

    y = segs[0] if k == 1 else jnp.concatenate(segs, axis=-1)
    o_ref[...] = y.astype(o_ref.dtype)


def _sublane_pack(dtype) -> int:
    # Rows per packed sublane group: 8 for 4-byte, 16 for 2-byte, 32 for 1-byte dtypes.
    itemsize = jnp.dtype(dtype).itemsize
    return max(8, 32 // itemsize)


def _vmem_budget_bytes() -> int:
    """Generation-aware scoped-VMEM budget (per core), with a safe fallback."""
    cap = 64 << 20  # v7x per-TC capacity; safe everywhere
    try:
        cap = int(pltpu.get_tpu_info().vmem_capacity_bytes)
    except Exception:
        pass
    return int(max(32 << 20, min((cap * 7) // 8, 112 << 20)))


def _pick_tile_rows(m, d_eff, dtype, vmem_budget, target_block_bytes=8 << 20):
    """Pick the row-tile: ~8 MiB blocks, bounded by the double-buffered VMEM working set."""
    itemsize = jnp.dtype(dtype).itemsize
    pack = _sublane_pack(dtype)
    if m <= pack:
        return int(m)  # single block == full row extent
    rows_target = target_block_bytes // max(1, d_eff * itemsize)
    # Working set per row: 2x double-buffered in + out blocks (+ ~3 f32 temporaries).
    per_row = d_eff * (4 * itemsize + 3 * 4)
    avail = vmem_budget - 2 * d_eff * 4 - (2 << 20)  # params + fixed margin
    rows_vmem = max(pack, avail // per_row)
    rows = max(pack, min(rows_target, rows_vmem))
    rows = (rows // pack) * pack
    m_round = -(-m // pack) * pack
    return int(min(rows, m_round))


@jax.jit
def layernorm_pallas(x, gamma, beta):
    """LayerNorm over the last axis of x (any leading shape), torch-compatible."""
    orig_shape = x.shape
    d = int(orig_shape[-1])
    x2 = x.reshape(-1, d)
    n = x2.shape[0]

    # Fold k rows into the lane axis so the block's last dim is a multiple of 128
    # (lane-dense loads/stores, no masked vst.msk). k == 1 when d % 128 == 0.
    k = 128 // gcd(d, 128)
    d_eff = k * d

    n_pad = -(-n // k) * k
    if n_pad != n:
        x2 = jnp.pad(x2, ((0, n_pad - n), (0, 0)))  # rows are independent; pad is discarded
    m = n_pad // k
    xf = x2.reshape(m, d_eff)

    # Cast affine params to f32 once here; tile them across the k folded segments.
    g2 = jnp.tile(gamma.astype(jnp.float32).reshape(1, d), (1, k))
    b2 = jnp.tile(beta.astype(jnp.float32).reshape(1, d), (1, k))

    vmem_budget = _vmem_budget_bytes()
    tile_rows = _pick_tile_rows(m, d_eff, x.dtype, vmem_budget)
    grid = pl.cdiv(m, tile_rows)  # ragged last block: OOB rows masked on writeback (row-wise op)

    itemsize = jnp.dtype(x.dtype).itemsize
    cost = pl.CostEstimate(
        flops=8 * n_pad * d,
        transcendentals=n_pad,                               # one rsqrt per row
        bytes_accessed=2 * n_pad * d * itemsize + 2 * d_eff * 4,
    )

    out = pl.pallas_call(
        partial(_prenorm_ln_kernel, k=k, d=d),
        out_shape=jax.ShapeDtypeStruct((m, d_eff), x.dtype),
        grid_spec=pltpu.PrefetchScalarGridSpec(
            num_scalar_prefetch=0,
            grid=(grid,),
            in_specs=[
                pl.BlockSpec((tile_rows, d_eff), lambda i: (i, 0)),
                pl.BlockSpec((1, d_eff), lambda i: (0, 0)),
                pl.BlockSpec((1, d_eff), lambda i: (0, 0)),
            ],
            out_specs=pl.BlockSpec((tile_rows, d_eff), lambda i: (i, 0)),
        ),
        compiler_params=pltpu.CompilerParams(
            dimension_semantics=("parallel",),   # shards rows across v7x's 2 TCs
            vmem_limit_bytes=int(vmem_budget),
        ),
        cost_estimate=cost,
    )(xf, g2, b2)

    out = out.reshape(n_pad, d)
    if n_pad != n:
        out = out[:n]
    return out.reshape(orig_shape)


class PreNorm:
    """JAX/Pallas equivalent of the PyTorch PreNorm module."""

    def __init__(self, dim, fn, gamma=None, beta=None):
        self.dim = dim
        self.fn = fn
        # Faithful nn.LayerNorm defaults: weight=1, bias=0.
        self.gamma = jnp.ones((dim,), jnp.float32) if gamma is None else gamma
        self.beta = jnp.zeros((dim,), jnp.float32) if beta is None else beta

    def __call__(self, x, **kwargs):
        x = layernorm_pallas(x, self.gamma, self.beta)
        return self.fn(x, **kwargs)


def _reference_layernorm(x, gamma, beta, eps=LN_EPS):
    x32 = x.astype(jnp.float32)
    mean = jnp.mean(x32, axis=-1, keepdims=True)
    var = jnp.mean((x32 - mean) ** 2, axis=-1, keepdims=True)
    y = (x32 - mean) / jnp.sqrt(var + eps) * gamma + beta
    return y.astype(x.dtype)


if __name__ == "__main__":
    key = jax.random.PRNGKey(0)
    k_x, k_w, k_b, k_x2 = jax.random.split(key, 4)

    # Case 1: lane-dense dim (d % 128 == 0) -- the main production path (k = 1).
    batch, seq, dim = 2, 8, 128
    x = jax.random.normal(k_x, (batch, seq, dim), dtype=jnp.float32)

    # Deterministic "fn": simple linear layer dim -> dim (stand-in for attention / FF block).
    w = jax.random.normal(k_w, (dim, dim), dtype=jnp.float32) * 0.02
    b = jax.random.normal(k_b, (dim,), dtype=jnp.float32) * 0.02
    fn = lambda y: y @ w + b

    gamma = 1.0 + 0.01 * jnp.arange(dim, dtype=jnp.float32)
    beta = 0.01 * jnp.arange(dim, dtype=jnp.float32)

    module = PreNorm(dim, fn, gamma=gamma, beta=beta)
    out = jax.block_until_ready(module(x))
    ref = fn(_reference_layernorm(x, gamma, beta))
    assert out.shape == (batch, seq, dim)
    assert jnp.allclose(out, ref, atol=2e-5, rtol=2e-5), "mismatch vs reference (dim=128)"

    # Case 2: narrow dim (32) exercises the row-fold (k = 4) lane-dense packing path,
    # with default nn.LayerNorm init (weight=1, bias=0) and identity fn.
    dim2 = 32
    x2 = jax.random.normal(k_x2, (batch, seq, dim2), dtype=jnp.float32)
    module2 = PreNorm(dim2, lambda y: y)
    out2 = jax.block_until_ready(module2(x2))
    ref2 = _reference_layernorm(x2, module2.gamma, module2.beta)
    assert out2.shape == (batch, seq, dim2)
    assert jnp.allclose(out2, ref2, atol=2e-5, rtol=2e-5), "mismatch vs reference (dim=32)"

    print("KERNEL_OK")
</pallas_src>

<mosaic_0001>
module attributes {stable_mosaic.version = 11 : i64} {
  func.func @_prenorm_ln_kernel(%arg0: i32, %arg1: memref<16x128xf32, #tpu.memory_space<vmem>>, %arg2: memref<1x128xf32, #tpu.memory_space<vmem>>, %arg3: memref<1x128xf32, #tpu.memory_space<vmem>>, %arg4: memref<16x128xf32, #tpu.memory_space<vmem>>) attributes {dimension_semantics = [#tpu.dimension_semantics<parallel>], iteration_bounds = array<i64: 1>, scalar_prefetch = 0 : i64, scratch_operands = 0 : i64, tpu.core_type = #tpu.core_type<tc>, window_params = [{transform_indices = @transform_0, window_bounds = array<i64: 16, 128>}, {pipeline_mode = #tpu.pipeline_mode<synchronous>, transform_indices = @transform_1, window_bounds = array<i64: 1, 128>}, {pipeline_mode = #tpu.pipeline_mode<synchronous>, transform_indices = @transform_2, window_bounds = array<i64: 1, 128>}, {transform_indices = @transform_3, window_bounds = array<i64: 16, 128>}]} {
    %c0 = arith.constant 0 : index
    %c0_0 = arith.constant 0 : index
    %0 = vector.load %arg1[%c0, %c0_0] : memref<16x128xf32, #tpu.memory_space<vmem>>, vector<16x128xf32>
    %c0_1 = arith.constant 0 : index
    %c0_2 = arith.constant 0 : index
    %1 = vector.load %arg2[%c0_1, %c0_2] : memref<1x128xf32, #tpu.memory_space<vmem>>, vector<1x128xf32>
    %c0_3 = arith.constant 0 : index
    %c0_4 = arith.constant 0 : index
    %2 = vector.load %arg3[%c0_3, %c0_4] : memref<1x128xf32, #tpu.memory_space<vmem>>, vector<1x128xf32>
    %cst = arith.constant dense<0.000000e+00> : vector<16xf32>
    %3 = vector.multi_reduction <add>, %0, %cst [1] : vector<16x128xf32> to vector<16xf32>
    %4 = vector.shape_cast %3 : vector<16xf32> to vector<16x1xf32>
    %5 = arith.mulf %0, %0 : vector<16x128xf32>
    %cst_5 = arith.constant dense<0.000000e+00> : vector<16xf32>
    %6 = vector.multi_reduction <add>, %5, %cst_5 [1] : vector<16x128xf32> to vector<16xf32>
    %7 = vector.shape_cast %6 : vector<16xf32> to vector<16x1xf32>
    %cst_6 = arith.constant 7.812500e-03 : f32
    %8 = vector.broadcast %cst_6 : f32 to vector<16x1xf32>
    %9 = arith.mulf %4, %8 : vector<16x1xf32>
    %cst_7 = arith.constant 7.812500e-03 : f32
    %10 = vector.broadcast %cst_7 : f32 to vector<16x1xf32>
    %11 = arith.mulf %7, %10 : vector<16x1xf32>
    %12 = arith.mulf %9, %9 : vector<16x1xf32>
    %13 = arith.subf %11, %12 : vector<16x1xf32>
    %cst_8 = arith.constant 0.000000e+00 : f32
    %14 = vector.broadcast %cst_8 : f32 to vector<16x1xf32>
    %15 = arith.maximumf %13, %14 : vector<16x1xf32>
    %cst_9 = arith.constant 9.99999974E-6 : f32
    %16 = vector.broadcast %cst_9 : f32 to vector<16x1xf32>
    %17 = arith.addf %15, %16 : vector<16x1xf32>
    %18 = math.rsqrt %17 : vector<16x1xf32>
    %19 = vector.broadcast %9 : vector<16x1xf32> to vector<16x128xf32>
    %20 = arith.subf %0, %19 : vector<16x128xf32>
    %21 = vector.broadcast %18 : vector<16x1xf32> to vector<16x128xf32>
    %22 = arith.mulf %20, %21 : vector<16x128xf32>
    %23 = vector.broadcast %1 : vector<1x128xf32> to vector<16x128xf32>
    %24 = arith.mulf %22, %23 : vector<16x128xf32>
    %25 = vector.broadcast %2 : vector<1x128xf32> to vector<16x128xf32>
    %26 = arith.addf %24, %25 : vector<16x128xf32>
    %c0_10 = arith.constant 0 : index
    %c0_11 = arith.constant 0 : index
    %27 = vector.load %arg4[%c0_10, %c0_11] : memref<16x128xf32, #tpu.memory_space<vmem>>, vector<16x128xf32>
    tpu.vector_store %arg4[%c0_10, %c0_11], %26 {strides = array<i32>} : memref<16x128xf32, #tpu.memory_space<vmem>>, vector<16x128xf32>,
    return
  }
  func.func @transform_0(%arg0: i32) -> (i32, i32) {
    %c0_i32 = arith.constant 0 : i32
    %c0_i32_0 = arith.constant 0 : i32
    return %arg0, %c0_i32 : i32, i32
  }
  func.func @transform_1(%arg0: i32) -> (i32, i32) {
    %c0_i32 = arith.constant 0 : i32
    %c0_i32_0 = arith.constant 0 : i32
    %c0_i32_1 = arith.constant 0 : i32
    return %c0_i32, %c0_i32_0 : i32, i32
  }
  func.func @transform_2(%arg0: i32) -> (i32, i32) {
    %c0_i32 = arith.constant 0 : i32
    %c0_i32_0 = arith.constant 0 : i32
    %c0_i32_1 = arith.constant 0 : i32
    return %c0_i32, %c0_i32_0 : i32, i32
  }
  func.func @transform_3(%arg0: i32) -> (i32, i32) {
    %c0_i32 = arith.constant 0 : i32
    %c0_i32_0 = arith.constant 0 : i32
    return %arg0, %c0_i32 : i32, i32
  }
}

</mosaic_0001>

<llo_original>
// kernel: layernorm_pallas.1
$region0: #{layernorm_pallas.1}
  #allocation0 [shape = 'u32[]', space=smem, size = 0x4, offset = 0x4, fixed_abs, tag = 'smem constant byte address 0x4 - core index']
  #allocation1 [shape = 'u32[144,128]{1,0:T(1,128)}', space=vmem, size = 0x12000, scoped, tag = 'internal scratch']
  %s0 = inlined_call_operand.hbm [shape: f32[16,128], index: 0, kind: input, shape index: {}]
  %s1 = inlined_call_operand.vmem [shape: f32[1,128], index: 1, kind: input, shape index: {}]
  %s2 = inlined_call_operand.vmem [shape: f32[1,128], index: 2, kind: input, shape index: {}]
  %s3 = inlined_call_operand.hbm [shape: f32[16,128], index: 3, kind: output, shape index: {}]
  %s4 = sld [smem:[#allocation0]]
  $region26: #{layernorm_pallas.1} parent=0
    _
  %s6 = ssub.s32 1, %s4
  %s7 = scalar_select 0, %s6, %s4
  $region1: #{layernorm_pallas.1} parent=0
    #allocation2 [shape = 'u8[8192]{0}', space=vmem, size = 0x2000, scoped, tag = 'input window, operand 0, single buffered']
    #allocation3 [shape = 's32[1]{0}', space=sflag, size = 0x4, scoped, tag = 'scoped memory for layernorm_pallas.1']
    #allocation4 [shape = 's32[1]{0}', space=sflag, size = 0x4, scoped, tag = 'scoped memory for layernorm_pallas.1']
    #allocation5 [shape = 'u8[8192]{0}', space=vmem, size = 0x2000, scoped, tag = 'output window, operand 0, single buffered']
    %8 = vsyncpa [#allocation3], 0
    %9 = vsyncpa [#allocation4], 0
    // Predicated region
    $region2: #{layernorm_pallas.1} parent=1 // pred_check
      _
    $region3: #{layernorm_pallas.1} parent=1 // pred_check_branch
      %11 = sbr.rel (0) target = $region5
    $region4: #{layernorm_pallas.1} parent=1 // pred_region
      %s13 = ssub.s32 256, 256
      %14 = vsyncadd [#allocation3], %s13
      %s15 = sshll.u32 [#allocation2], 4
      %s16 = int_to_ptr.vmem [resolvable:$true] %s15
      %21 = dma.hbm_to_vmem [thread:$0]  %s0, 256, %s16, [#allocation3], 128, 128, 8
    $region5: #{layernorm_pallas.1} parent=1 // pred_fallthru
      _
    // Predicated region
    $region6: #{layernorm_pallas.1} parent=1 // pred_check
      _
    $region7: #{layernorm_pallas.1} parent=1 // pred_check_branch
      %23 = sbr.rel (0) target = $region9
    $region8: #{layernorm_pallas.1} parent=1 // pred_region
      _
    $region9: #{layernorm_pallas.1} parent=1 // pred_fallthru
      _
    // Predicated region
    $region10: #{layernorm_pallas.1} parent=1 // pred_check
      _
    $region11: #{layernorm_pallas.1} parent=1 // pred_check_branch
      %25 = sbr.rel (0) target = $region13
    $region12: #{layernorm_pallas.1} parent=1 // pred_region
      _
    $region13: #{layernorm_pallas.1} parent=1 // pred_fallthru
      _
    // Predicated region
    $region14: #{layernorm_pallas.1} parent=1 // pred_check
      _
    $region15: #{layernorm_pallas.1} parent=1 // pred_check_branch
      %27 = sbr.rel (0) target = $region17
    $region16: #{layernorm_pallas.1} parent=1 // pred_region
      %28 = dma.done [#allocation3], 256
    $region17: #{layernorm_pallas.1} parent=1 // pred_fallthru
      _
    %v29 = vld [vmem:[#allocation2] sm:$0xff]
    %v30 = vld [vmem:[#allocation2 + $0x8] sm:$0xff]
    %v31 = vld [vmem:[%s1] sm:$0x1]
    %v32 = vld [vmem:[%s2] sm:$0x1]
    %33 = vadd.xlane.f32.xlu0 %v29
    %v34 = vpop.xlane.xlu0 %33
    %35 = vadd.xlane.f32.xlu0 %v30
    %v36 = vpop.xlane.xlu0 %35
    %v37 = vmul.f32 %v29, %v29
    %v38 = vmul.f32 %v30, %v30
    %39 = vadd.xlane.f32.xlu0 %v37
    %v40 = vpop.xlane.xlu0 %39
    %41 = vadd.xlane.f32.xlu0 %v38
    %v42 = vpop.xlane.xlu0 %41
    %v43 = vmul.f32 %v34, 0.0078125
    %v44 = vmul.f32 %v36, 0.0078125
    %v45 = vmul.f32 %v40, 0.0078125
    %v46 = vmul.f32 %v42, 0.0078125
    %v47 = vmul.f32 %v43, %v43
    %v48 = vmul.f32 %v44, %v44
    %v49 = vsub.f32 %v45, %v47
    %v50 = vsub.f32 %v46, %v48
    %v51 = vmax.f32 %v49, 0.0
    %v52 = vmax.f32 %v50, 0.0
    %v53 = vadd.f32 %v51, 1e-05
    %v54 = vadd.f32 %v52, 1e-05
    %v55 = vrsqrt.pop %v53
    %v56 = vrsqrt.pop %v54
    %v57 = vsub.f32 %v29, %v43
    %v58 = vsub.f32 %v30, %v44
    %v59 = vmul.f32 %v57, %v55
    %v60 = vmul.f32 %v58, %v56
    %v62 = vlaneseq
    %v63 = vshrl.u32 %v62, 7
    %v64 = vsub.s32 0, %v63
    %v65 = vrot.slane %v31, %v64
    %v67 = vmul.f32 %v59, %v65
    %v68 = vmul.f32 %v60, %v65
    %v70 = vlaneseq
    %v71 = vshrl.u32 %v70, 7
    %v72 = vsub.s32 0, %v71
    %v73 = vrot.slane %v32, %v72
    %v75 = vadd.f32 %v67, %v73
    %v76 = vadd.f32 %v68, %v73
    %77 = vst [vmem:[#allocation5] sm:$0xff] %v75
    %78 = vst [vmem:[#allocation5 + $0x8] sm:$0xff] %v76
    // Predicated region
    $region18: #{layernorm_pallas.1} parent=1 // pred_check
      _
    $region19: #{layernorm_pallas.1} parent=1 // pred_check_branch
      %80 = sbr.rel (0) target = $region21
    $region20: #{layernorm_pallas.1} parent=1 // pred_region
      %s82 = ssub.s32 256, 256
      %83 = vsyncadd [#allocation4], %s82
      %s84 = sshll.u32 [#allocation5], 4
      %s85 = int_to_ptr.vmem [resolvable:$true] %s84
      %90 = dma.vmem_to_hbm [thread:$0]  %s85, 256, %s3, [#allocation4], 128, 128, 8
    $region21: #{layernorm_pallas.1} parent=1 // pred_fallthru
      _
    // Predicated region
    $region22: #{layernorm_pallas.1} parent=1 // pred_check
      _
    $region23: #{layernorm_pallas.1} parent=1 // pred_check_branch
      %92 = sbr.rel (0) target = $region25
    $region24: #{layernorm_pallas.1} parent=1 // pred_region
      %93 = dma.done [#allocation4], 256
    $region25: #{layernorm_pallas.1} parent=1 // pred_fallthru
      _
    %94 = vsyncpa [#allocation3], 1
    %95 = vsyncpa [#allocation4], 1

</llo_original>
